<compile_context>
chip_gen: v5e
topology: v5e:2x2
jax: 0.10.0
libtpu: 0.0.40
codegen_flags: <defaults>
</compile_context>

<pallas_src>
import functools

import jax
import jax.numpy as jnp
from jax.experimental import pallas as pl
from jax.experimental.pallas import tpu as pltpu


_LANE = 128  # lane width: last-dim alignment


def _round_up(x, m):
    return (x + m - 1) // m * m


@functools.lru_cache(maxsize=1)
def _vmem_capacity_bytes():
    """Per-core VMEM capacity (generation aware), with a conservative fallback."""
    try:
        info = pltpu.get_tpu_info()
        cap = int(getattr(info, "vmem_capacity_bytes"))
        if cap > 0:
            return cap
    except Exception:
        pass
    return 64 << 20  # conservative default (v7x per-TC VMEM)


def _spec(block_shape, index_map, *, buffers=None):
    """BlockSpec with optional pipeline buffer count (fallback if unsupported)."""
    if buffers is not None and hasattr(pl, "Buffered"):
        try:
            return pl.BlockSpec(block_shape, index_map,
                                pipeline_mode=pl.Buffered(buffers))
        except TypeError:
            pass
    return pl.BlockSpec(block_shape, index_map)


# ----------------------------------------------------------------------------
# Kernels
# ----------------------------------------------------------------------------
def _mlp_kernel_fused(x_ref, w1_ref, b1_ref, w2_ref, b2_ref, o_ref):
    """Resident-weight fast path: one batch tile -> full output tile."""
    h = jnp.dot(x_ref[...], w1_ref[...], preferred_element_type=jnp.float32)
    h = jnp.maximum(h + b1_ref[...], 0.0)
    o_ref[...] = (jnp.dot(h.astype(w2_ref.dtype), w2_ref[...],
                          preferred_element_type=jnp.float32)
                  + b2_ref[...]).astype(o_ref.dtype)


def _mlp_kernel_hstream(x_ref, w1_ref, b1_ref, w2_ref, b2_ref, o_ref, acc_ref):
    """Hidden-streamed path: accumulate fc2 partial products over hidden slabs."""
    hj = pl.program_id(1)

    @pl.when(hj == 0)
    def _init():
        acc_ref[...] = jnp.zeros_like(acc_ref)

    h = jnp.dot(x_ref[...], w1_ref[...], preferred_element_type=jnp.float32)
    h = jnp.maximum(h + b1_ref[...], 0.0)
    acc_ref[...] += jnp.dot(h.astype(w2_ref.dtype), w2_ref[...],
                            preferred_element_type=jnp.float32)

    @pl.when(hj == pl.num_programs(1) - 1)
    def _finalize():
        o_ref[...] = (acc_ref[...] + b2_ref[...]).astype(o_ref.dtype)


# ----------------------------------------------------------------------------
# Parameter preparation (hoisted out of the per-call hot path)
# ----------------------------------------------------------------------------
def prepare_mlp_params(w1, b1, w2, b2, *, compute_dtype=None, block_h=None):
    """Pad/cast parameters once. w1: (D_in, H), b1: (H,), w2: (H, D_out), b2: (D_out,).

    Returns (padded_params, config) where config carries the static dims and the
    chosen hidden tile size (block_h == padded H => fully resident weights).
    """
    D_in, H = w1.shape
    D_out = w2.shape[1]
    cdt = jnp.dtype(compute_dtype) if compute_dtype is not None else jnp.dtype(w1.dtype)
    itemsize = cdt.itemsize

    Dp_in = _round_up(D_in, _LANE)
    Dp_out = _round_up(D_out, _LANE)
    Hp = _round_up(H, _LANE)

    vmem_cap = _vmem_capacity_bytes()
    # ~35 MiB on v7x (64 MiB VMEM), ~70 MiB on v5e/v6e (128 MiB VMEM).
    weight_budget = int(0.55 * vmem_cap)

    if block_h is None:
        if (Dp_in + Dp_out) * Hp * itemsize <= weight_budget:
            block_h = Hp  # fully resident, single-buffered weight specs
        else:
            # Streamed slabs are double-buffered -> 2x footprint. Halve in 256
            # granules (v6e/v7x MXU contraction depth); 128 only when H < 256.
            gran = 256 if Hp >= 256 else _LANE
            block_h = Hp
            while (2 * (Dp_in + Dp_out) * block_h * itemsize > weight_budget
                   and block_h > gran):
                block_h = max(gran, _round_up(block_h // 2, gran))
    else:
        block_h = min(_round_up(block_h, _LANE), Hp)
    Hp = _round_up(Hp, block_h)

    # Zero-padding flows through matmul/bias/ReLU as exact zeros.
    w1_p = jnp.pad(jnp.asarray(w1, cdt), ((0, Dp_in - D_in), (0, Hp - H)))
    w2_p = jnp.pad(jnp.asarray(w2, cdt), ((0, Hp - H), (0, Dp_out - D_out)))
    b1_p = jnp.pad(jnp.asarray(b1, jnp.float32), (0, Hp - H)).reshape(1, Hp)
    b2_p = jnp.pad(jnp.asarray(b2, jnp.float32), (0, Dp_out - D_out)).reshape(1, Dp_out)

    params = (w1_p, b1_p, w2_p, b2_p)
    config = dict(d_in=D_in, h=H, d_out=D_out, block_h=int(block_h))
    return params, config


# ----------------------------------------------------------------------------
# Forward
# ----------------------------------------------------------------------------
@functools.partial(jax.jit,
                   static_argnames=("d_out", "block_b", "block_h", "vmem_limit"))
def _mlp_forward_padded(x, w1_p, b1_p, w2_p, b2_p, *,
                        d_out, block_b, block_h, vmem_limit):
    B, D_in = x.shape
    Dp_in, Hp = w1_p.shape
    Dp_out = w2_p.shape[1]
    out_dtype = x.dtype
    itemsize = jnp.dtype(w1_p.dtype).itemsize

    Bp = _round_up(B, block_b)
    nb = Bp // block_b
    resident = (block_h == Hp)

    # Per-call cost: only x needs padding/casting (weights were prepared once).
    x_p = jnp.pad(jnp.asarray(x, w1_p.dtype), ((0, Bp - B), (0, Dp_in - D_in)))

    flops = 2 * Bp * Hp * (Dp_in + Dp_out)
    weight_bytes = (Dp_in + Dp_out) * Hp * itemsize
    bytes_accessed = (Bp * Dp_in * itemsize
                      + weight_bytes * (1 if resident else nb)
                      + Bp * Dp_out * jnp.dtype(out_dtype).itemsize)
    cost = pl.CostEstimate(flops=int(flops), transcendentals=0,
                           bytes_accessed=int(bytes_accessed))

    if resident:
        # Fused fast path: 1-D parallel grid over batch tiles, no accumulator,
        # grid-invariant weights/biases single-buffered.
        grid = (nb,)
        in_specs = [
            pl.BlockSpec((block_b, Dp_in), lambda i: (i, 0)),        # x tile
            _spec((Dp_in, Hp), lambda i: (0, 0), buffers=1),         # W1 (resident)
            _spec((1, Hp), lambda i: (0, 0), buffers=1),             # b1
            _spec((Hp, Dp_out), lambda i: (0, 0), buffers=1),        # W2 (resident)
            _spec((1, Dp_out), lambda i: (0, 0), buffers=1),         # b2
        ]
        out_specs = pl.BlockSpec((block_b, Dp_out), lambda i: (i, 0))
        kernel = _mlp_kernel_fused
        scratch = []
        dim_sem = ("parallel",)
    else:
        # Hidden-streamed path: trailing "arbitrary" reduction axis + f32 acc.
        grid = (nb, Hp // block_h)
        in_specs = [
            pl.BlockSpec((block_b, Dp_in), lambda i, j: (i, 0)),     # x tile
            pl.BlockSpec((Dp_in, block_h), lambda i, j: (0, j)),     # W1 slab
            pl.BlockSpec((1, block_h), lambda i, j: (0, j)),         # b1 slab
            pl.BlockSpec((block_h, Dp_out), lambda i, j: (j, 0)),    # W2 slab
            _spec((1, Dp_out), lambda i, j: (0, 0), buffers=1),      # b2 (invariant)
        ]
        out_specs = pl.BlockSpec((block_b, Dp_out), lambda i, j: (i, 0))
        kernel = _mlp_kernel_hstream
        scratch = [pltpu.VMEM((block_b, Dp_out), jnp.float32)]
        dim_sem = ("parallel", "arbitrary")

    out_p = pl.pallas_call(
        kernel,
        out_shape=jax.ShapeDtypeStruct((Bp, Dp_out), out_dtype),
        grid_spec=pltpu.PrefetchScalarGridSpec(
            num_scalar_prefetch=0,
            grid=grid,
            in_specs=in_specs,
            out_specs=out_specs,
            scratch_shapes=scratch,
        ),
        compiler_params=pltpu.CompilerParams(
            dimension_semantics=dim_sem,
            vmem_limit_bytes=vmem_limit,
        ),
        cost_estimate=cost,
    )(x_p, w1_p, b1_p, w2_p, b2_p)

    # Strip alignment padding.
    return out_p[:B, :d_out]


def mlp_forward(x, padded_params, config, *, block_b=None):
    """x: (B, D_in). padded_params/config come from prepare_mlp_params."""
    w1_p, b1_p, w2_p, b2_p = padded_params
    B, D_in = x.shape
    assert D_in == config["d_in"], "x feature dim does not match prepared params"

    Dp_in, Hp = w1_p.shape
    Dp_out = w2_p.shape[1]
    block_h = config["block_h"]
    d_out = config["d_out"]
    resident = (block_h == Hp)

    itemsize = jnp.dtype(w1_p.dtype).itemsize
    out_itemsize = jnp.dtype(x.dtype).itemsize
    row_align = 16 if itemsize == 2 else 8  # sublane alignment for batch dim

    # Batch tile: big (amortize ~0.35us/step, fill the 256-row MXU), but keep
    # >= 2 parallel batch tiles whenever the batch permits (v7x has 2 TCs).
    if block_b is None:
        block_b = 512 if resident else 256
    block_b = max(row_align, _round_up(block_b, row_align))
    block_b = min(block_b, _round_up(B, row_align))
    if B >= 2 * row_align:
        block_b = min(block_b, _round_up((B + 1) // 2, row_align))
    Bp = _round_up(B, block_b)

    # VMEM accounting: double-buffered x/out, single- or double-buffered
    # weights, the fc1 intermediate h (f32 + bf16 copy on the bf16 path) and
    # the accumulator when streaming. 1.3x safety factor.
    weight_buf = 1 if resident else 2
    vmem_need = (2 * block_b * Dp_in * itemsize                       # x tiles
                 + 2 * block_b * Dp_out * out_itemsize                # out tiles
                 + weight_buf * (Dp_in + Dp_out) * block_h * itemsize  # W1/W2
                 + weight_buf * block_h * 4 + Dp_out * 4              # biases
                 + block_b * block_h * 4                              # fc1 h (f32)
                 + (block_b * block_h * itemsize if itemsize < 4 else 0)  # bf16 h copy
                 + (0 if resident else block_b * Dp_out * 4))         # accumulator
    vmem_cap = _vmem_capacity_bytes()
    vmem_limit = int(min(max(int(1.3 * vmem_need), 16 << 20), int(0.85 * vmem_cap)))

    return _mlp_forward_padded(x, w1_p, b1_p, w2_p, b2_p,
                               d_out=d_out, block_b=int(block_b),
                               block_h=int(block_h), vmem_limit=vmem_limit)


# ----------------------------------------------------------------------------
# Init / reference / demo
# ----------------------------------------------------------------------------
def init_mlp_params(key, input_size, hidden_size, output_size, dtype=jnp.float32):
    """Deterministic init mimicking torch.nn.Linear's uniform(-1/sqrt(fan_in), ...)."""
    k1, k2, k3, k4 = jax.random.split(key, 4)
    bound1 = 1.0 / jnp.sqrt(jnp.array(input_size, dtype))
    bound2 = 1.0 / jnp.sqrt(jnp.array(hidden_size, dtype))
    # Stored already transposed relative to PyTorch: (in_features, out_features).
    w1 = jax.random.uniform(k1, (input_size, hidden_size), dtype, -bound1, bound1)
    b1 = jax.random.uniform(k2, (hidden_size,), dtype, -bound1, bound1)
    w2 = jax.random.uniform(k3, (hidden_size, output_size), dtype, -bound2, bound2)
    b2 = jax.random.uniform(k4, (output_size,), dtype, -bound2, bound2)
    return w1, b1, w2, b2


def _ref_mlp(x, w1, b1, w2, b2):
    return jnp.maximum(x @ w1 + b1, 0.0) @ w2 + b2


# TODO(synk): the PyTorch module's fit()/predict() training loop (Adam, L1Loss,
# DataLoader) is host-side training logic, not part of the forward kernel.

if __name__ == "__main__":
    key = jax.random.PRNGKey(0)
    k_x, k_p, k_p2 = jax.random.split(key, 3)

    # LSM-readout-style MLP shapes: reservoir states -> hidden -> outputs.
    batch, input_size, hidden_size, output_size = 256, 100, 64, 10

    x = jax.random.normal(k_x, (batch, input_size), dtype=jnp.float32)
    w1, b1, w2, b2 = init_mlp_params(k_p, input_size, hidden_size, output_size)
    ref = _ref_mlp(x, w1, b1, w2, b2)

    # 1) f32, resident weights: fused single-pass kernel, single-buffered
    #    weight specs, 2 parallel batch tiles.
    params, cfg = prepare_mlp_params(w1, b1, w2, b2)
    out = jax.block_until_ready(mlp_forward(x, params, cfg))
    assert out.shape == (batch, output_size)
    assert jnp.allclose(out, ref, atol=2e-3, rtol=2e-3)

    # 2) Hidden-streamed accumulator path (forced block_h < Hp; grid = (2, 2)).
    w1b, b1b, w2b, b2b = init_mlp_params(k_p2, input_size, 200, output_size)
    params2, cfg2 = prepare_mlp_params(w1b, b1b, w2b, b2b, block_h=128)
    out2 = jax.block_until_ready(mlp_forward(x, params2, cfg2, block_b=128))
    ref2 = _ref_mlp(x, w1b, b1b, w2b, b2b)
    assert jnp.allclose(out2, ref2, atol=2e-3, rtol=2e-3)

    # 3) bf16 matmuls with f32 accumulation (looser tolerance by design).
    params3, cfg3 = prepare_mlp_params(w1, b1, w2, b2, compute_dtype=jnp.bfloat16)
    out3 = jax.block_until_ready(mlp_forward(x, params3, cfg3))
    assert jnp.allclose(out3, ref, atol=5e-2, rtol=5e-2)

    print("KERNEL_OK")
</pallas_src>

<mosaic_0001>
module attributes {stable_mosaic.version = 11 : i64} {
  func.func @_mlp_kernel_fused(%arg0: i32, %arg1: memref<128x128xf32, #tpu.memory_space<vmem>>, %arg2: memref<128x128xf32, #tpu.memory_space<vmem>>, %arg3: memref<1x128xf32, #tpu.memory_space<vmem>>, %arg4: memref<128x128xf32, #tpu.memory_space<vmem>>, %arg5: memref<1x128xf32, #tpu.memory_space<vmem>>, %arg6: memref<128x128xf32, #tpu.memory_space<vmem>>) attributes {dimension_semantics = [#tpu.dimension_semantics<parallel>], iteration_bounds = array<i64: 2>, scalar_prefetch = 0 : i64, scratch_operands = 0 : i64, tpu.core_type = #tpu.core_type<tc>, window_params = [{transform_indices = @transform_0, window_bounds = array<i64: 128, 128>}, {pipeline_mode = #tpu.pipeline_mode<synchronous>, transform_indices = @transform_1, window_bounds = array<i64: 128, 128>}, {pipeline_mode = #tpu.pipeline_mode<synchronous>, transform_indices = @transform_2, window_bounds = array<i64: 1, 128>}, {pipeline_mode = #tpu.pipeline_mode<synchronous>, transform_indices = @transform_3, window_bounds = array<i64: 128, 128>}, {pipeline_mode = #tpu.pipeline_mode<synchronous>, transform_indices = @transform_4, window_bounds = array<i64: 1, 128>}, {transform_indices = @transform_5, window_bounds = array<i64: 128, 128>}]} {
    %c0 = arith.constant 0 : index
    %c0_0 = arith.constant 0 : index
    %0 = vector.load %arg1[%c0, %c0_0] : memref<128x128xf32, #tpu.memory_space<vmem>>, vector<128x128xf32>
    %c0_1 = arith.constant 0 : index
    %c0_2 = arith.constant 0 : index
    %1 = vector.load %arg2[%c0_1, %c0_2] : memref<128x128xf32, #tpu.memory_space<vmem>>, vector<128x128xf32>
    %cst = arith.constant dense<0.000000e+00> : vector<128x128xf32>
    %2 = tpu.matmul %0, %1, %cst {dimension_numbers = #tpu.dot_dimension_numbers<[1], [0], [0], [1], [0, 0, 1, 1], [], []>} : vector<128x128xf32>, vector<128x128xf32>, vector<128x128xf32> -> vector<128x128xf32>
    %c0_3 = arith.constant 0 : index
    %c0_4 = arith.constant 0 : index
    %3 = vector.load %arg3[%c0_3, %c0_4] : memref<1x128xf32, #tpu.memory_space<vmem>>, vector<1x128xf32>
    %4 = vector.broadcast %3 : vector<1x128xf32> to vector<128x128xf32>
    %5 = arith.addf %2, %4 : vector<128x128xf32>
    %cst_5 = arith.constant 0.000000e+00 : f32
    %6 = vector.broadcast %cst_5 : f32 to vector<128x128xf32>
    %7 = arith.maximumf %5, %6 : vector<128x128xf32>
    %c0_6 = arith.constant 0 : index
    %c0_7 = arith.constant 0 : index
    %8 = vector.load %arg4[%c0_6, %c0_7] : memref<128x128xf32, #tpu.memory_space<vmem>>, vector<128x128xf32>
    %cst_8 = arith.constant dense<0.000000e+00> : vector<128x128xf32>
    %9 = tpu.matmul %7, %8, %cst_8 {dimension_numbers = #tpu.dot_dimension_numbers<[1], [0], [0], [1], [0, 0, 1, 1], [], []>} : vector<128x128xf32>, vector<128x128xf32>, vector<128x128xf32> -> vector<128x128xf32>
    %c0_9 = arith.constant 0 : index
    %c0_10 = arith.constant 0 : index
    %10 = vector.load %arg5[%c0_9, %c0_10] : memref<1x128xf32, #tpu.memory_space<vmem>>, vector<1x128xf32>
    %11 = vector.broadcast %10 : vector<1x128xf32> to vector<128x128xf32>
    %12 = arith.addf %9, %11 : vector<128x128xf32>
    %c0_11 = arith.constant 0 : index
    %c0_12 = arith.constant 0 : index
    %13 = vector.load %arg6[%c0_11, %c0_12] : memref<128x128xf32, #tpu.memory_space<vmem>>, vector<128x128xf32>
    tpu.vector_store %arg6[%c0_11, %c0_12], %12 {strides = array<i32>} : memref<128x128xf32, #tpu.memory_space<vmem>>, vector<128x128xf32>,
    return
  }
  func.func @transform_0(%arg0: i32) -> (i32, i32) {
    %c0_i32 = arith.constant 0 : i32
    %c0_i32_0 = arith.constant 0 : i32
    return %arg0, %c0_i32 : i32, i32
  }
  func.func @transform_1(%arg0: i32) -> (i32, i32) {
    %c0_i32 = arith.constant 0 : i32
    %c0_i32_0 = arith.constant 0 : i32
    %c0_i32_1 = arith.constant 0 : i32
    return %c0_i32, %c0_i32_0 : i32, i32
  }
  func.func @transform_2(%arg0: i32) -> (i32, i32) {
    %c0_i32 = arith.constant 0 : i32
    %c0_i32_0 = arith.constant 0 : i32
    %c0_i32_1 = arith.constant 0 : i32
    return %c0_i32, %c0_i32_0 : i32, i32
  }
  func.func @transform_3(%arg0: i32) -> (i32, i32) {
    %c0_i32 = arith.constant 0 : i32
    %c0_i32_0 = arith.constant 0 : i32
    %c0_i32_1 = arith.constant 0 : i32
    return %c0_i32, %c0_i32_0 : i32, i32
  }
  func.func @transform_4(%arg0: i32) -> (i32, i32) {
    %c0_i32 = arith.constant 0 : i32
    %c0_i32_0 = arith.constant 0 : i32
    %c0_i32_1 = arith.constant 0 : i32
    return %c0_i32, %c0_i32_0 : i32, i32
  }
  func.func @transform_5(%arg0: i32) -> (i32, i32) {
    %c0_i32 = arith.constant 0 : i32
    %c0_i32_0 = arith.constant 0 : i32
    return %arg0, %c0_i32 : i32, i32
  }
}

</mosaic_0001>

<llo_original>
// kernel: _mlp_forward_padded.1
$region0: #{_mlp_forward_padded.1}
  #allocation0 [shape = 'u32[]', space=smem, size = 0x4, offset = 0x4, fixed_abs, tag = 'smem constant byte address 0x4 - core index']
  #allocation1 [shape = 'u32[72,128]{1,0:T(1,128)}', space=vmem, size = 0x9000, scoped, tag = 'internal scratch']
  %s0 = inlined_call_operand.vmem [shape: f32[256,128], index: 0, kind: input, shape index: {}]
  %s1 = inlined_call_operand.vmem [shape: f32[128,128], index: 1, kind: input, shape index: {}]
  %s2 = inlined_call_operand.vmem [shape: f32[1,128], index: 2, kind: input, shape index: {}]
  %s3 = inlined_call_operand.vmem [shape: f32[128,128], index: 3, kind: input, shape index: {}]
  %s4 = inlined_call_operand.vmem [shape: f32[1,128], index: 4, kind: input, shape index: {}]
  %s5 = inlined_call_operand.vmem [shape: f32[256,128], index: 5, kind: output, shape index: {}]
  %s6 = sld [smem:[#allocation0]]
  $region53: #{_mlp_forward_padded.1} parent=0
    _
  %s8 = ssub.s32 1, %s6
  %s9 = scalar_select 0, %s8, %s6
  loop: start=0, step=1, limit=4
  $region2: #{_mlp_forward_padded.1} parent=0 // loop_pre_header
    _
  $region3: #{_mlp_forward_padded.1} parent=0 // loop_header
    %s11 = sphi 0, %s15
    %p12 = scmp.ge.s32.totalorder %s11, 4
    %s21 = sphi 0, %s23
    %s24 = sphi 0, %s21
    %s25 = sphi 0, %s24
    %s41 = sphi 0, %s25
    %s45 = sphi 0, %s45
    %s47 = sphi 0, %s45
    %s48 = sphi 0, %s47
    %s62 = sphi 0, %s48
    %s66 = sphi 0, %s66
    %s68 = sphi 0, %s66
    %s69 = sphi 0, %s68
    %s83 = sphi 0, %s69
    %s87 = sphi 0, %s87
    %s89 = sphi 0, %s87
    %s90 = sphi 0, %s89
    %s104 = sphi 0, %s90
    %s108 = sphi 0, %s108
    %s110 = sphi 0, %s108
    %s111 = sphi 0, %s110
    %s125 = sphi 0, %s111
    %s131 = sphi 0, %s133
    %s134 = sphi 0, %s131
    %s135 = sphi 0, %s134
    %s151 = sphi 0, %s135
  $region4: #{_mlp_forward_padded.1} parent=0 // loop_header_branch
    %14 = sbr.rel (%p12) target = $region8
  $region5: #{_mlp_forward_padded.1} parent=0 // loop_body
    %s16 = ssub.s32 %s11, 1
    %s17 = ssub.s32 %s11, 2
    %s18 = sadd.s32 %s11, 1
    %s19 = ssub.s32 %s11, %s18
    %p20 = scmp.eq.s32.totalorder %s19, 0
    %s22 = sadd.s32 %s21, 1
    %s23 = scalar_select %p20, %s21, %s22
    %p26 = pneg %p20
    %p27 = scmp.eq.s32.totalorder %s11, 1
    %p28 = por %p26, %p27
    %p29 = scmp.ne.s32.totalorder %s21, %s24
    %p30 = scmp.eq.s32.totalorder %s11, 0
    %p31 = por %p29, %p30
    %p32 = scmp.ne.s32.totalorder %s21, %s24
    %p33 = scmp.eq.s32.totalorder %s16, 1
    %p34 = por %p32, %p33
    %p35 = scmp.ne.s32.totalorder %s24, %s25
    %p36 = scmp.eq.s32.totalorder %s16, 0
    %p37 = por %p35, %p36
    %p38 = scmp.ne.s32.totalorder %s24, %s25
    %p39 = scmp.eq.s32.totalorder %s17, 1
    %p40 = por %p38, %p39
    %p42 = scmp.ne.s32.totalorder %s25, %s41
    %p43 = scmp.eq.s32.totalorder %s17, 0
    %p44 = por %p42, %p43
    %s46 = sadd.s32 %s45, 1
    %p49 = scmp.eq.s32.totalorder %s11, 1
    %p50 = scmp.ne.s32.totalorder %s45, %s47
    %p51 = scmp.eq.s32.totalorder %s11, 0
    %p52 = por %p50, %p51
    %p53 = scmp.ne.s32.totalorder %s45, %s47
    %p54 = scmp.eq.s32.totalorder %s16, 1
    %p55 = por %p53, %p54
    %p56 = scmp.ne.s32.totalorder %s47, %s48
    %p57 = scmp.eq.s32.totalorder %s16, 0
    %p58 = por %p56, %p57
    %p59 = scmp.ne.s32.totalorder %s47, %s48
    %p60 = scmp.eq.s32.totalorder %s17, 1
    %p61 = por %p59, %p60
    %p63 = scmp.ne.s32.totalorder %s48, %s62
    %p64 = scmp.eq.s32.totalorder %s17, 0
    %p65 = por %p63, %p64
    %s67 = sadd.s32 %s66, 1
    %p70 = scmp.eq.s32.totalorder %s11, 1
    %p71 = scmp.ne.s32.totalorder %s66, %s68
    %p72 = scmp.eq.s32.totalorder %s11, 0
    %p73 = por %p71, %p72
    %p74 = scmp.ne.s32.totalorder %s66, %s68
    %p75 = scmp.eq.s32.totalorder %s16, 1
    %p76 = por %p74, %p75
    %p77 = scmp.ne.s32.totalorder %s68, %s69
    %p78 = scmp.eq.s32.totalorder %s16, 0
    %p79 = por %p77, %p78
    %p80 = scmp.ne.s32.totalorder %s68, %s69
    %p81 = scmp.eq.s32.totalorder %s17, 1
    %p82 = por %p80, %p81
    %p84 = scmp.ne.s32.totalorder %s69, %s83
    %p85 = scmp.eq.s32.totalorder %s17, 0
    %p86 = por %p84, %p85
    %s88 = sadd.s32 %s87, 1
    %p91 = scmp.eq.s32.totalorder %s11, 1
    %p92 = scmp.ne.s32.totalorder %s87, %s89
    %p93 = scmp.eq.s32.totalorder %s11, 0
    %p94 = por %p92, %p93
    %p95 = scmp.ne.s32.totalorder %s87, %s89
    %p96 = scmp.eq.s32.totalorder %s16, 1
    %p97 = por %p95, %p96
    %p98 = scmp.ne.s32.totalorder %s89, %s90
    %p99 = scmp.eq.s32.totalorder %s16, 0
    %p100 = por %p98, %p99
    %p101 = scmp.ne.s32.totalorder %s89, %s90
    %p102 = scmp.eq.s32.totalorder %s17, 1
    %p103 = por %p101, %p102
    %p105 = scmp.ne.s32.totalorder %s90, %s104
    %p106 = scmp.eq.s32.totalorder %s17, 0
    %p107 = por %p105, %p106
    %s109 = sadd.s32 %s108, 1
    %p112 = scmp.eq.s32.totalorder %s11, 1
    %p113 = scmp.ne.s32.totalorder %s108, %s110
    %p114 = scmp.eq.s32.totalorder %s11, 0
    %p115 = por %p113, %p114
    %p116 = scmp.ne.s32.totalorder %s108, %s110
    %p117 = scmp.eq.s32.totalorder %s16, 1
    %p118 = por %p116, %p117
    %p119 = scmp.ne.s32.totalorder %s110, %s111
    %p120 = scmp.eq.s32.totalorder %s16, 0
    %p121 = por %p119, %p120
    %p122 = scmp.ne.s32.totalorder %s110, %s111
    %p123 = scmp.eq.s32.totalorder %s17, 1
    %p124 = por %p122, %p123
    %p126 = scmp.ne.s32.totalorder %s111, %s125
    %p127 = scmp.eq.s32.totalorder %s17, 0
    %p128 = por %p126, %p127
    %s129 = ssub.s32 %s11, %s18
    %p130 = scmp.eq.s32.totalorder %s129, 0
    %s132 = sadd.s32 %s131, 1
    %s133 = scalar_select %p130, %s131, %s132
    %p136 = pneg %p130
    %p137 = scmp.eq.s32.totalorder %s11, 1
    %p138 = por %p136, %p137
    %p139 = scmp.ne.s32.totalorder %s131, %s134
    %p140 = scmp.eq.s32.totalorder %s11, 0
    %p141 = por %p139, %p140
    %p142 = scmp.ne.s32.totalorder %s131, %s134
    %p143 = scmp.eq.s32.totalorder %s16, 1
    %p144 = por %p142, %p143
    %p145 = scmp.ne.s32.totalorder %s134, %s135
    %p146 = scmp.eq.s32.totalorder %s16, 0
    %p147 = por %p145, %p146
    %p148 = scmp.ne.s32.totalorder %s134, %s135
    %p149 = scmp.eq.s32.totalorder %s17, 1
    %p150 = por %p148, %p149
    %p152 = scmp.ne.s32.totalorder %s135, %s151
    %p153 = scmp.eq.s32.totalorder %s17, 0
    %p154 = por %p152, %p153
    %p155 = scmp.le.s32.totalorder 1, %s11
    %p156 = scmp.lt.s32.totalorder %s11, 3
    %p157 = pnand %p155, %p156
    %p158 = pneg %p157
    // Predicated region
    $region9: #{_mlp_forward_padded.1} parent=5 // pred_check
      _
    $region10: #{_mlp_forward_padded.1} parent=5 // pred_check_branch
      %160 = sbr.rel (%p157) target = $region12
    $region11: #{_mlp_forward_padded.1} parent=5 // pred_region
      %s161 = ssub.s32 %s11, 1
      // Predicated region
      $region13: #{_mlp_forward_padded.1} parent=11 // pred_check
        %p162 = pneg %p58
      $region14: #{_mlp_forward_padded.1} parent=11 // pred_check_branch
        %164 = sbr.rel (%p162) target = $region16
      $region15: #{_mlp_forward_padded.1} parent=11 // pred_region
        _
      $region16: #{_mlp_forward_padded.1} parent=11 // pred_fallthru
        _
      // Predicated region
      $region17: #{_mlp_forward_padded.1} parent=11 // pred_check
        %p165 = pneg %p79
      $region18: #{_mlp_forward_padded.1} parent=11 // pred_check_branch
        %167 = sbr.rel (%p165) target = $region20
      $region19: #{_mlp_forward_padded.1} parent=11 // pred_region
        _
      $region20: #{_mlp_forward_padded.1} parent=11 // pred_fallthru
        _
      // Predicated region
      $region21: #{_mlp_forward_padded.1} parent=11 // pred_check
        %p168 = pneg %p100
      $region22: #{_mlp_forward_padded.1} parent=11 // pred_check_branch
        %170 = sbr.rel (%p168) target = $region24
      $region23: #{_mlp_forward_padded.1} parent=11 // pred_region
        _
      $region24: #{_mlp_forward_padded.1} parent=11 // pred_fallthru
        _
      // Predicated region
      $region25: #{_mlp_forward_padded.1} parent=11 // pred_check
        %p171 = pneg %p121
      $region26: #{_mlp_forward_padded.1} parent=11 // pred_check_branch
        %173 = sbr.rel (%p171) target = $region28
      $region27: #{_mlp_forward_padded.1} parent=11 // pred_region
        _
      $region28: #{_mlp_forward_padded.1} parent=11 // pred_fallthru
        _
    $region12: #{_mlp_forward_padded.1} parent=5 // pred_fallthru
      _
    %p174 = scmp.lt.s32.totalorder %s11, 2
    // Predicated region
    $region29: #{_mlp_forward_padded.1} parent=5 // pred_check
      %p175 = pneg %p174
    $region30: #{_mlp_forward_padded.1} parent=5 // pred_check_branch
      %177 = sbr.rel (%p175) target = $region32
    $region31: #{_mlp_forward_padded.1} parent=5 // pred_region
      // Predicated region
      $region33: #{_mlp_forward_padded.1} parent=31 // pred_check
        %p178 = pneg %p31
      $region34: #{_mlp_forward_padded.1} parent=31 // pred_check_branch
        %180 = sbr.rel (%p178) target = $region36
      $region35: #{_mlp_forward_padded.1} parent=31 // pred_region
        %s181 = smul.u32 16, %s11
        %p182 = scmp.lt.s32.totalorder %s181, 31
        %s183 = scalar_select %p182, %s181, 31
        %s184 = smul.addr %s183, 8
        %s185 = scalar_lea.vmem %s0, %s184
        %s186 = smul.u32 16, %s11
      $region36: #{_mlp_forward_padded.1} parent=31 // pred_fallthru
        _
    $region32: #{_mlp_forward_padded.1} parent=5 // pred_fallthru
      _
    %p187 = scmp.le.s32.totalorder 1, %s11
    %p188 = scmp.lt.s32.totalorder %s11, 3
    %p189 = pnand %p187, %p188
    %p190 = pneg %p189
    // Predicated region
    $region37: #{_mlp_forward_padded.1} parent=5 // pred_check
      _
    $region38: #{_mlp_forward_padded.1} parent=5 // pred_check_branch
      %192 = sbr.rel (%p189) target = $region40
    $region39: #{_mlp_forward_padded.1} parent=5 // pred_region
      %s193 = ssub.s32 %s11, 1
      %s194 = smul.u32 16, %s16
      %p195 = scmp.lt.s32.totalorder %s194, 31
      %s196 = scalar_select %p195, %s194, 31
      %s197 = smul.addr %s196, 8
      %s198 = scalar_lea.vmem %s0, %s197
      %p199 = pneg %p37
      %p200 = pneg %p34
      %p201 = pneg %p58
      %p202 = pneg %p55
      %p203 = pneg %p79
      %p204 = pneg %p76
      %p205 = pneg %p100
      %p206 = pneg %p97
      %p207 = pneg %p121
      %p208 = pneg %p118
      %p209 = pneg %p147
      %p210 = pneg %p144
      %s211 = smul.u32 16, %s16
      %p212 = scmp.lt.s32.totalorder %s211, 31
      %s213 = scalar_select %p212, %s211, 31
      %s214 = smul.addr %s213, 8
      %s215 = scalar_lea.vmem %s5, %s214
      %s216 = smul.u32 16, %s16
      %p217 = scmp.lt.s32.totalorder %s216, 31
      %s218 = scalar_select %p217, %s216, 31
      %s219 = smul.addr %s218, 8
      %s220 = scalar_lea.vmem %s0, %s219
      %s221 = smul.u32 16, %s16
      %s222 = smul.u32 16, %s16
      %p223 = scmp.lt.s32.totalorder %s222, 31
      %s224 = scalar_select %p223, %s222, 31
      %s225 = smul.addr %s224, 8
      %s226 = scalar_lea.vmem %s5, %s225
      %s227 = smul.u32 16, %s16
      %v228 = vld [vmem:[%s220] sm:$0xff]
      %v229 = vld [vmem:[%s220 + $0x8] sm:$0xff]
      %v230 = vld [vmem:[%s220 + $0x10] sm:$0xff]
      %v231 = vld [vmem:[%s220 + $0x18] sm:$0xff]
      %v232 = vld [vmem:[%s220 + $0x20] sm:$0xff]
      %v233 = vld [vmem:[%s220 + $0x28] sm:$0xff]
      %v234 = vld [vmem:[%s220 + $0x30] sm:$0xff]
      %v235 = vld [vmem:[%s220 + $0x38] sm:$0xff]
      %v236 = vld [vmem:[%s220 + $0x40] sm:$0xff]
      %v237 = vld [vmem:[%s220 + $0x48] sm:$0xff]
      %v238 = vld [vmem:[%s220 + $0x50] sm:$0xff]
      %v239 = vld [vmem:[%s220 + $0x58] sm:$0xff]
      %v240 = vld [vmem:[%s220 + $0x60] sm:$0xff]
      %v241 = vld [vmem:[%s220 + $0x68] sm:$0xff]
      %v242 = vld [vmem:[%s220 + $0x70] sm:$0xff]
      %v243 = vld [vmem:[%s220 + $0x78] sm:$0xff]
      %v244 = vld [vmem:[%s1] sm:$0xff]
      %v245 = vld [vmem:[%s1 + $0x8] sm:$0xff]
      %v246 = vld [vmem:[%s1 + $0x10] sm:$0xff]
      %v247 = vld [vmem:[%s1 + $0x18] sm:$0xff]
      %v248 = vld [vmem:[%s1 + $0x20] sm:$0xff]
      %v249 = vld [vmem:[%s1 + $0x28] sm:$0xff]
      %v250 = vld [vmem:[%s1 + $0x30] sm:$0xff]
      %v251 = vld [vmem:[%s1 + $0x38] sm:$0xff]
      %v252 = vld [vmem:[%s1 + $0x40] sm:$0xff]
      %v253 = vld [vmem:[%s1 + $0x48] sm:$0xff]
      %v254 = vld [vmem:[%s1 + $0x50] sm:$0xff]
      %v255 = vld [vmem:[%s1 + $0x58] sm:$0xff]
      %v256 = vld [vmem:[%s1 + $0x60] sm:$0xff]
      %v257 = vld [vmem:[%s1 + $0x68] sm:$0xff]
      %v258 = vld [vmem:[%s1 + $0x70] sm:$0xff]
      %v259 = vld [vmem:[%s1 + $0x78] sm:$0xff]
      %v260 = vld [vmem:[%s2] sm:$0x1]
      %v262 = vperm.slane %v260, 0
      %264 = vmatpush.msra.mxu0 %v259
      %265 = vmatpush.msra.mxu0 %v258
      %266 = vmatpush.msra.mxu0 %v257
      %267 = vmatpush.msra.mxu0 %v256
      %268 = vmatpush.msra.mxu0 %v255
      %269 = vmatpush.msra.mxu0 %v254
      %270 = vmatpush.msra.mxu0 %v253
      %271 = vmatpush.msra.mxu0 %v252
      %272 = vmatpush.msra.mxu0 %v251
      %273 = vmatpush.msra.mxu0 %v250
      %274 = vmatpush.msra.mxu0 %v249
      %275 = vmatpush.msra.mxu0 %v248
      %276 = vmatpush.msra.mxu0 %v247
      %277 = vmatpush.msra.mxu0 %v246
      %278 = vmatpush.msra.mxu0 %v245
      %279 = vmatpush.msra.mxu0 %v244
      %280 = vmatmul.f32.gmra.mxu0 %v228
      %v281 = vpop.f32.mrf.mxu0
      %v282 = vadd.f32 %v262, %v281
      %283 = vmatmul.f32.gmra.mxu0 %v229
      %v284 = vpop.f32.mrf.mxu0
      %v285 = vadd.f32 %v262, %v284
      %286 = vmatmul.f32.gmra.mxu0 %v230
      %v287 = vpop.f32.mrf.mxu0
      %v288 = vadd.f32 %v262, %v287
      %289 = vmatmul.f32.gmra.mxu0 %v231
      %v290 = vpop.f32.mrf.mxu0
      %v291 = vadd.f32 %v262, %v290
      %292 = vmatmul.f32.gmra.mxu0 %v232
      %v293 = vpop.f32.mrf.mxu0
      %v294 = vadd.f32 %v262, %v293
      %295 = vmatmul.f32.gmra.mxu0 %v233
      %v296 = vpop.f32.mrf.mxu0
      %v297 = vadd.f32 %v262, %v296
      %298 = vmatmul.f32.gmra.mxu0 %v234
      %v299 = vpop.f32.mrf.mxu0
      %v300 = vadd.f32 %v262, %v299
      %301 = vmatmul.f32.gmra.mxu0 %v235
      %v302 = vpop.f32.mrf.mxu0
      %v303 = vadd.f32 %v262, %v302
      %304 = vmatmul.f32.gmra.mxu0 %v236
      %v305 = vpop.f32.mrf.mxu0
      %v306 = vadd.f32 %v262, %v305
      %307 = vmatmul.f32.gmra.mxu0 %v237
      %v308 = vpop.f32.mrf.mxu0
      %v309 = vadd.f32 %v262, %v308
      %310 = vmatmul.f32.gmra.mxu0 %v238
      %v311 = vpop.f32.mrf.mxu0
      %v312 = vadd.f32 %v262, %v311
      %313 = vmatmul.f32.gmra.mxu0 %v239
      %v314 = vpop.f32.mrf.mxu0
      %v315 = vadd.f32 %v262, %v314
      %316 = vmatmul.f32.gmra.mxu0 %v240
      %v317 = vpop.f32.mrf.mxu0
      %v318 = vadd.f32 %v262, %v317
      %319 = vmatmul.f32.gmra.mxu0 %v241
      %v320 = vpop.f32.mrf.mxu0
      %v321 = vadd.f32 %v262, %v320
      %322 = vmatmul.f32.gmra.mxu0 %v242
      %v323 = vpop.f32.mrf.mxu0
      %v324 = vadd.f32 %v262, %v323
      %325 = vmatmul.f32.gmra.mxu0 %v243
      %v326 = vpop.f32.mrf.mxu0
      %v327 = vadd.f32 %v262, %v326
      %328 = vdwg.mxu0
      %v329 = vmax.f32 %v282, 0.0
      %v330 = vmax.f32 %v285, 0.0
      %v331 = vmax.f32 %v288, 0.0
      %v332 = vmax.f32 %v291, 0.0
      %v333 = vmax.f32 %v294, 0.0
      %v334 = vmax.f32 %v297, 0.0
      %v335 = vmax.f32 %v300, 0.0
      %v336 = vmax.f32 %v303, 0.0
      %v337 = vmax.f32 %v306, 0.0
      %v338 = vmax.f32 %v309, 0.0
      %v339 = vmax.f32 %v312, 0.0
      %v340 = vmax.f32 %v315, 0.0
      %v341 = vmax.f32 %v318, 0.0
      %v342 = vmax.f32 %v321, 0.0
      %v343 = vmax.f32 %v324, 0.0
      %v344 = vmax.f32 %v327, 0.0
      %v345 = vld [vmem:[%s3] sm:$0xff]
      %v346 = vld [vmem:[%s3 + $0x8] sm:$0xff]
      %v347 = vld [vmem:[%s3 + $0x10] sm:$0xff]
      %v348 = vld [vmem:[%s3 + $0x18] sm:$0xff]
      %v349 = vld [vmem:[%s3 + $0x20] sm:$0xff]
      %v350 = vld [vmem:[%s3 + $0x28] sm:$0xff]
      %v351 = vld [vmem:[%s3 + $0x30] sm:$0xff]
      %v352 = vld [vmem:[%s3 + $0x38] sm:$0xff]
      %v353 = vld [vmem:[%s3 + $0x40] sm:$0xff]
      %v354 = vld [vmem:[%s3 + $0x48] sm:$0xff]
      %v355 = vld [vmem:[%s3 + $0x50] sm:$0xff]
      %v356 = vld [vmem:[%s3 + $0x58] sm:$0xff]
      %v357 = vld [vmem:[%s3 + $0x60] sm:$0xff]
      %v358 = vld [vmem:[%s3 + $0x68] sm:$0xff]
      %v359 = vld [vmem:[%s3 + $0x70] sm:$0xff]
      %v360 = vld [vmem:[%s3 + $0x78] sm:$0xff]
      %v361 = vld [vmem:[%s4] sm:$0x1]
      %v363 = vperm.slane %v361, 0
      %365 = vmatpush.msra.mxu0 %v360
      %366 = vmatpush.msra.mxu0 %v359
      %367 = vmatpush.msra.mxu0 %v358
      %368 = vmatpush.msra.mxu0 %v357
      %369 = vmatpush.msra.mxu0 %v356
      %370 = vmatpush.msra.mxu0 %v355
      %371 = vmatpush.msra.mxu0 %v354
      %372 = vmatpush.msra.mxu0 %v353
      %373 = vmatpush.msra.mxu0 %v352
      %374 = vmatpush.msra.mxu0 %v351
      %375 = vmatpush.msra.mxu0 %v350
      %376 = vmatpush.msra.mxu0 %v349
      %377 = vmatpush.msra.mxu0 %v348
      %378 = vmatpush.msra.mxu0 %v347
      %379 = vmatpush.msra.mxu0 %v346
      %380 = vmatpush.msra.mxu0 %v345
      %381 = vmatmul.f32.gmra.mxu0 %v329
      %v382 = vpop.f32.mrf.mxu0
      %v383 = vadd.f32 %v363, %v382
      %384 = vmatmul.f32.gmra.mxu0 %v330
      %v385 = vpop.f32.mrf.mxu0
      %v386 = vadd.f32 %v363, %v385
      %387 = vmatmul.f32.gmra.mxu0 %v331
      %v388 = vpop.f32.mrf.mxu0
      %v389 = vadd.f32 %v363, %v388
      %390 = vmatmul.f32.gmra.mxu0 %v332
      %v391 = vpop.f32.mrf.mxu0
      %v392 = vadd.f32 %v363, %v391
      %393 = vmatmul.f32.gmra.mxu0 %v333
      %v394 = vpop.f32.mrf.mxu0
      %v395 = vadd.f32 %v363, %v394
      %396 = vmatmul.f32.gmra.mxu0 %v334
      %v397 = vpop.f32.mrf.mxu0
      %v398 = vadd.f32 %v363, %v397
      %399 = vmatmul.f32.gmra.mxu0 %v335
      %v400 = vpop.f32.mrf.mxu0
      %v401 = vadd.f32 %v363, %v400
      %402 = vmatmul.f32.gmra.mxu0 %v336
      %v403 = vpop.f32.mrf.mxu0
      %v404 = vadd.f32 %v363, %v403
      %405 = vmatmul.f32.gmra.mxu0 %v337
      %v406 = vpop.f32.mrf.mxu0
      %v407 = vadd.f32 %v363, %v406
      %408 = vmatmul.f32.gmra.mxu0 %v338
      %v409 = vpop.f32.mrf.mxu0
      %v410 = vadd.f32 %v363, %v409
      %411 = vmatmul.f32.gmra.mxu0 %v339
      %v412 = vpop.f32.mrf.mxu0
      %v413 = vadd.f32 %v363, %v412
      %414 = vmatmul.f32.gmra.mxu0 %v340
      %v415 = vpop.f32.mrf.mxu0
      %v416 = vadd.f32 %v363, %v415
      %417 = vmatmul.f32.gmra.mxu0 %v341
      %v418 = vpop.f32.mrf.mxu0
      %v419 = vadd.f32 %v363, %v418
      %420 = vmatmul.f32.gmra.mxu0 %v342
      %v421 = vpop.f32.mrf.mxu0
      %v422 = vadd.f32 %v363, %v421
      %423 = vmatmul.f32.gmra.mxu0 %v343
      %v424 = vpop.f32.mrf.mxu0
      %v425 = vadd.f32 %v363, %v424
      %426 = vmatmul.f32.gmra.mxu0 %v344
      %v427 = vpop.f32.mrf.mxu0
      %v428 = vadd.f32 %v363, %v427
      %429 = vdwg.mxu0
      %430 = vst [vmem:[%s226] sm:$0xff] %v383
      %431 = vst [vmem:[%s226 + $0x8] sm:$0xff] %v386
      %432 = vst [vmem:[%s226 + $0x10] sm:$0xff] %v389
      %433 = vst [vmem:[%s226 + $0x18] sm:$0xff] %v392
      %434 = vst [vmem:[%s226 + $0x20] sm:$0xff] %v395
      %435 = vst [vmem:[%s226 + $0x28] sm:$0xff] %v398
      %436 = vst [vmem:[%s226 + $0x30] sm:$0xff] %v401
      %437 = vst [vmem:[%s226 + $0x38] sm:$0xff] %v404
      %438 = vst [vmem:[%s226 + $0x40] sm:$0xff] %v407
      %439 = vst [vmem:[%s226 + $0x48] sm:$0xff] %v410
      %440 = vst [vmem:[%s226 + $0x50] sm:$0xff] %v413
      %441 = vst [vmem:[%s226 + $0x58] sm:$0xff] %v416
      %442 = vst [vmem:[%s226 + $0x60] sm:$0xff] %v419
      %443 = vst [vmem:[%s226 + $0x68] sm:$0xff] %v422
      %444 = vst [vmem:[%s226 + $0x70] sm:$0xff] %v425
      %445 = vst [vmem:[%s226 + $0x78] sm:$0xff] %v428
      %s446 = smul.u32 16, %s16
      %p447 = scmp.lt.s32.totalorder %s446, 31
      %s448 = scalar_select %p447, %s446, 31
      %s449 = smul.addr %s448, 8
      %s450 = scalar_lea.vmem %s5, %s449
      // Predicated region
      $region41: #{_mlp_forward_padded.1} parent=39 // pred_check
        %p451 = pneg %p144
      $region42: #{_mlp_forward_padded.1} parent=39 // pred_check_branch
        %453 = sbr.rel (%p451) target = $region44
      $region43: #{_mlp_forward_padded.1} parent=39 // pred_region
        %s454 = smul.u32 16, %s16
      $region44: #{_mlp_forward_padded.1} parent=39 // pred_fallthru
        _
    $region40: #{_mlp_forward_padded.1} parent=5 // pred_fallthru
      _
    %p455 = scmp.le.s32.totalorder 2, %s11
    // Predicated region
    $region45: #{_mlp_forward_padded.1} parent=5 // pred_check
      %p456 = pneg %p455
    $region46: #{_mlp_forward_padded.1} parent=5 // pred_check_branch
      %458 = sbr.rel (%p456) target = $region48
    $region47: #{_mlp_forward_padded.1} parent=5 // pred_region
      %s459 = ssub.s32 %s11, 2
      // Predicated region
      $region49: #{_mlp_forward_padded.1} parent=47 // pred_check
        %p460 = pneg %p150
      $region50: #{_mlp_forward_padded.1} parent=47 // pred_check_branch
        %462 = sbr.rel (%p460) target = $region52
      $region51: #{_mlp_forward_padded.1} parent=47 // pred_region
        %s463 = smul.u32 16, %s17
        %p464 = scmp.lt.s32.totalorder %s463, 31
        %s465 = scalar_select %p464, %s463, 31
        %s466 = smul.addr %s465, 8
        %s467 = scalar_lea.vmem %s5, %s466
      $region52: #{_mlp_forward_padded.1} parent=47 // pred_fallthru
        _
    $region48: #{_mlp_forward_padded.1} parent=5 // pred_fallthru
      _
  $region6: #{_mlp_forward_padded.1} parent=0 // loop_footer
    %s15 = sadd.s32 1, %s11
  $region7: #{_mlp_forward_padded.1} parent=0 // loop_footer_branch
    %10 = sbr.rel target = $region3
  $region8: #{_mlp_forward_padded.1} parent=0 // loop_exit
    _

</llo_original>
